<compile_context>
chip_gen: v5e
topology: v5e:2x2
jax: 0.10.0
libtpu: 0.0.40
codegen_flags: <defaults>
</compile_context>

<pallas_src>
import functools
import math

import jax
import jax.numpy as jnp
from jax.experimental import pallas as pl
from jax.experimental.pallas import tpu as pltpu


# ---------------------------------------------------------------------------
# Kernel
# ---------------------------------------------------------------------------
def group_lstm_cell_kernel(x_ref, h_ref, c_ref,
                           w_sep_ref, b_sep_ref,
                           ws_bd_ref, bs_ref,
                           rrep_ref, msum_ref,
                           hc_out_ref, score_out_ref,
                           *, num_lstms, hidden_size):
    N, H = num_lstms, hidden_size
    NH = N * H
    G = 4 * NH

    x = x_ref[...]                                   # (B, I)
    h = h_ref[...]                                   # (B, H)
    c = c_ref[...]                                   # (B, H)

    # One fused MXU matmul: [x | h] @ [[Wi,0],[0,Wh]] -> [i2h(x) | h2h(h)]
    # (columns already gate-major: [i | f | o | g], each N*H lanes wide).
    xh = jnp.concatenate([x, h], axis=-1)            # (B, I+H)
    mm_dtype = w_sep_ref.dtype                       # f32 or bf16 weights
    combined = jnp.dot(xh.astype(mm_dtype), w_sep_ref[...],
                       preferred_element_type=jnp.float32) + b_sep_ref[...]  # (B, 2G) f32

    ih = combined[:, :G]                             # (B, G)
    hh = combined[:, G:]                             # (B, G)
    pre = ih + hh                                    # (B, G)

    # Full-width gate nonlinearities (each slab is exactly N*H lanes).
    i_t = jax.nn.sigmoid(pre[:, 0 * NH:1 * NH])
    f_t = jax.nn.sigmoid(pre[:, 1 * NH:2 * NH])
    o_t = jax.nn.sigmoid(pre[:, 2 * NH:3 * NH])
    g_t = jnp.tanh(pre[:, 3 * NH:4 * NH])

    # Same input c is shared by every LSTM block (matches the module).
    c_tiled = jnp.concatenate([c] * N, axis=-1)      # (B, NH)
    c_all = c_tiled * f_t + i_t * g_t                # (B, NH)  per-block c_t
    h_all = o_t * jnp.tanh(c_all)                    # (B, NH)  per-block h_t

    # Scorer: ReLU([i2h | h2h]) @ block-diagonal(2G, N) on the MXU.
    relu_cat = jnp.maximum(combined, 0.0)            # (B, 2G)
    logits = jnp.dot(relu_cat.astype(ws_bd_ref.dtype), ws_bd_ref[...],
                     preferred_element_type=jnp.float32) + bs_ref[...]       # (B, N)

    # Stable softmax over the num_lstms dim (reciprocal on the EUP path).
    m = jnp.max(logits, axis=-1, keepdims=True)
    e = jnp.exp(logits - m)
    score = e * pl.reciprocal(jnp.sum(e, axis=-1, keepdims=True))            # (B, N)

    # Broadcast score over each block's H lanes via a 0/1 matmul (no reshape).
    score_rep = jnp.dot(score, rrep_ref[...],
                        preferred_element_type=jnp.float32)                  # (B, NH)

    # Mixture: weight, then group-sum over N blocks as one 0/1 matmul
    # producing a single lane-dense (B, 2H) output slab [h_out | c_out].
    weighted = jnp.concatenate([h_all * score_rep, c_all * score_rep], axis=-1)  # (B, 2NH)
    hc_out_ref[...] = jnp.dot(weighted, msum_ref[...],
                              preferred_element_type=jnp.float32)            # (B, 2H)
    score_out_ref[...] = score


# ---------------------------------------------------------------------------
# Host-side (free) parameter repacking from PyTorch layouts
# ---------------------------------------------------------------------------
def _permute_gate_cols(w, N, H):
    """Columns: block-major [n, gate, j] -> gate-major [gate, n, j]."""
    K = w.shape[0]
    return w.reshape(K, N, 4, H).transpose(0, 2, 1, 3).reshape(K, 4 * N * H)


def prepare_group_lstm_params(i2h_w, i2h_b, h2h_w, h2h_b, glw_w, glw_b,
                              *, num_lstms, hidden_size,
                              matmul_dtype=jnp.float32):
    """Repack PyTorch-layout params into kernel operands.

    i2h_w: (4*N*H, I)   i2h_b: (4*N*H,)
    h2h_w: (4*N*H, H)   h2h_b: (4*N*H,)
    glw_w: (N, 8*H, 1)  glw_b: (1, N, 1)      (GroupLinearLayer)
    """
    N, H = num_lstms, hidden_size
    G = 4 * N * H
    I = i2h_w.shape[1]

    wi = _permute_gate_cols(i2h_w.T.astype(jnp.float32), N, H)          # (I, G)
    wh = _permute_gate_cols(h2h_w.T.astype(jnp.float32), N, H)          # (H, G)
    bi = _permute_gate_cols(i2h_b.reshape(1, G).astype(jnp.float32), N, H)
    bh = _permute_gate_cols(h2h_b.reshape(1, G).astype(jnp.float32), N, H)

    # Block-form weight: one matmul yields [i2h(x) | h2h(h)].
    w_sep = jnp.concatenate(
        [jnp.concatenate([wi, jnp.zeros((I, G), jnp.float32)], axis=1),
         jnp.concatenate([jnp.zeros((H, G), jnp.float32), wh], axis=1)],
        axis=0).astype(matmul_dtype)                                     # (I+H, 2G)
    b_sep = jnp.concatenate([bi, bh], axis=1)                            # (1, 2G) f32

    # Block-diagonal scorer weight in the permuted (gate-major) column order.
    ws_r = glw_w.reshape(N, 2, 4, H).astype(jnp.float32)                 # (n, p, g, j)
    ws_t = jnp.transpose(ws_r, (1, 2, 0, 3))                             # (p, g, n, j)
    ws_bd = (ws_t[..., None]
             * jnp.eye(N, dtype=jnp.float32)[None, None, :, None, :]
             ).reshape(2 * G, N).astype(matmul_dtype)                    # (2G, N)
    bs = glw_b.reshape(1, N).astype(jnp.float32)

    # 0/1 helper matrices (kept f32: exact select/sum, trivial VMEM cost).
    rrep = jnp.repeat(jnp.eye(N, dtype=jnp.float32), H, axis=1)          # (N, N*H)
    msum = jnp.tile(jnp.eye(H, dtype=jnp.float32), (N, 1))               # (N*H, H)
    z = jnp.zeros_like(msum)
    msum2 = jnp.concatenate(
        [jnp.concatenate([msum, z], axis=1),
         jnp.concatenate([z, msum], axis=1)], axis=0)                    # (2NH, 2H)

    return w_sep, b_sep, ws_bd, bs, rrep, msum2


# ---------------------------------------------------------------------------
# Wrapper
# ---------------------------------------------------------------------------
def group_lstm_cell(x, h, c, params, *, num_lstms, hidden_size):
    w_sep, b_sep, ws_bd, bs, rrep, msum = params
    B, I = x.shape
    H = hidden_size
    N = num_lstms
    G = 4 * N * H
    NH = N * H

    full = lambda shape: pl.BlockSpec(shape, lambda i: tuple(0 for _ in shape))
    kernel = functools.partial(group_lstm_cell_kernel,
                               num_lstms=N, hidden_size=H)

    # Note: grid is a single step at these tiny shapes; with a large batch a
    # "parallel" batch-tile axis would let v7x's second TensorCore share work.
    hc, score = pl.pallas_call(
        kernel,
        out_shape=(
            jax.ShapeDtypeStruct((B, 2 * H), jnp.float32),
            jax.ShapeDtypeStruct((B, N), jnp.float32),
        ),
        grid=(1,),
        in_specs=[
            full((B, I)),               # x
            full((B, H)),               # h
            full((B, H)),               # c
            full((I + H, 2 * G)),       # fused block-form [Wi;Wh] (gate-major cols)
            full((1, 2 * G)),           # fused bias [bi | bh]
            full((2 * G, N)),           # block-diagonal scorer weight
            full((1, N)),               # scorer bias
            full((N, NH)),              # score lane-broadcast matrix
            full((2 * NH, 2 * H)),      # group-sum matrix for [h | c]
        ],
        out_specs=(
            full((B, 2 * H)),           # lane-dense [h_out | c_out]
            full((B, N)),
        ),
        compiler_params=pltpu.CompilerParams(
            dimension_semantics=("arbitrary",)),
    )(x, h, c, w_sep, b_sep, ws_bd, bs, rrep, msum)

    h_out = hc[:, :H]
    c_out = hc[:, H:]
    # PyTorch returns score with a trailing singleton dim: (B, N, 1)
    return h_out, c_out, score[..., None]


# ---------------------------------------------------------------------------
# Pure-JAX reference of the PyTorch forward (original layouts)
# ---------------------------------------------------------------------------
def ref_forward(x, h, c, i2h_w, i2h_b, h2h_w, h2h_b, glw_w, glw_b, N, H):
    B = x.shape[0]
    ih = (x @ i2h_w.T + i2h_b).reshape(B, N, 4 * H)
    hh = (h @ h2h_w.T + h2h_b).reshape(B, N, 4 * H)
    cat = jnp.maximum(jnp.concatenate([ih, hh], axis=-1), 0.0)   # (B, N, 8H)
    logits = jnp.einsum('bnk,nko->bno', cat, glw_w) + glw_b      # (B, N, 1)
    score = jax.nn.softmax(logits, axis=1)                       # (B, N, 1)
    pre = ih + hh
    gates = jax.nn.sigmoid(pre[:, :, :3 * H])
    g_t = jnp.tanh(pre[:, :, 3 * H:])
    i_t = gates[:, :, :H]
    f_t = gates[:, :, H:2 * H]
    o_t = gates[:, :, 2 * H:]                                    # [i|f|o|g] ordering
    c_t = c[:, None, :] * f_t + i_t * g_t
    h_t = o_t * jnp.tanh(c_t)
    h_out = (h_t * score).sum(axis=1)
    c_out = (c_t * score).sum(axis=1)
    return h_out, c_out, score


if __name__ == "__main__":
    B, I, H, N = 2, 16, 32, 4
    G = 4 * N * H

    key = jax.random.PRNGKey(0)
    k = jax.random.split(key, 9)

    bi2h = 1.0 / math.sqrt(I)
    bh2h = 1.0 / math.sqrt(H)
    bglw = math.sqrt(1.0 / (8 * H))

    # Parameters in their native PyTorch layouts.
    i2h_w = jax.random.uniform(k[0], (G, I), jnp.float32, -bi2h, bi2h)
    i2h_b = jax.random.uniform(k[1], (G,), jnp.float32, -bi2h, bi2h)
    h2h_w = jax.random.uniform(k[2], (G, H), jnp.float32, -bh2h, bh2h)
    h2h_b = jax.random.uniform(k[3], (G,), jnp.float32, -bh2h, bh2h)
    glw_w = jax.random.uniform(k[4], (N, 8 * H, 1), jnp.float32, -bglw, bglw)
    glw_b = jax.random.uniform(k[5], (1, N, 1), jnp.float32, -bglw, bglw)

    x = jax.random.normal(k[6], (B, I), jnp.float32)
    h = jax.random.normal(k[7], (B, H), jnp.float32)
    c = jax.random.normal(k[8], (B, H), jnp.float32)

    h_ref, c_ref, s_ref = ref_forward(x, h, c, i2h_w, i2h_b, h2h_w, h2h_b,
                                      glw_w, glw_b, N, H)

    # --- f32 weight path (tight check) ---
    params_f32 = prepare_group_lstm_params(
        i2h_w, i2h_b, h2h_w, h2h_b, glw_w, glw_b,
        num_lstms=N, hidden_size=H, matmul_dtype=jnp.float32)
    h_out, c_out, score = group_lstm_cell(x, h, c, params_f32,
                                          num_lstms=N, hidden_size=H)
    jax.block_until_ready((h_out, c_out, score))
    assert jnp.allclose(h_out, h_ref, atol=1e-4, rtol=1e-4)
    assert jnp.allclose(c_out, c_ref, atol=1e-4, rtol=1e-4)
    assert jnp.allclose(score, s_ref, atol=1e-4, rtol=1e-4)

    # --- bf16 weight path (halves HBM weight bytes on v6e/v7x; f32 accum) ---
    params_bf16 = prepare_group_lstm_params(
        i2h_w, i2h_b, h2h_w, h2h_b, glw_w, glw_b,
        num_lstms=N, hidden_size=H, matmul_dtype=jnp.bfloat16)
    h_bf, c_bf, s_bf = group_lstm_cell(x, h, c, params_bf16,
                                       num_lstms=N, hidden_size=H)
    jax.block_until_ready((h_bf, c_bf, s_bf))
    assert jnp.allclose(h_bf, h_ref, atol=5e-2, rtol=5e-2)
    assert jnp.allclose(c_bf, c_ref, atol=5e-2, rtol=5e-2)
    assert jnp.allclose(s_bf, s_ref, atol=5e-2, rtol=5e-2)

    print("KERNEL_OK")
</pallas_src>

<mosaic_0001>
module attributes {stable_mosaic.version = 11 : i64} {
  func.func @group_lstm_cell_kernel(%arg0: i32, %arg1: memref<2x16xf32, #tpu.memory_space<vmem>>, %arg2: memref<2x32xf32, #tpu.memory_space<vmem>>, %arg3: memref<2x32xf32, #tpu.memory_space<vmem>>, %arg4: memref<48x1024xf32, #tpu.memory_space<vmem>>, %arg5: memref<1x1024xf32, #tpu.memory_space<vmem>>, %arg6: memref<1024x4xf32, #tpu.memory_space<vmem>>, %arg7: memref<1x4xf32, #tpu.memory_space<vmem>>, %arg8: memref<4x128xf32, #tpu.memory_space<vmem>>, %arg9: memref<256x64xf32, #tpu.memory_space<vmem>>, %arg10: memref<2x64xf32, #tpu.memory_space<vmem>>, %arg11: memref<2x4xf32, #tpu.memory_space<vmem>>) attributes {dimension_semantics = [#tpu.dimension_semantics<arbitrary>], iteration_bounds = array<i64: 1>, scalar_prefetch = 0 : i64, scratch_operands = 0 : i64, tpu.core_type = #tpu.core_type<tc>, window_params = [{pipeline_mode = #tpu.pipeline_mode<synchronous>, transform_indices = @transform_0, window_bounds = array<i64: 2, 16>}, {pipeline_mode = #tpu.pipeline_mode<synchronous>, transform_indices = @transform_1, window_bounds = array<i64: 2, 32>}, {pipeline_mode = #tpu.pipeline_mode<synchronous>, transform_indices = @transform_2, window_bounds = array<i64: 2, 32>}, {pipeline_mode = #tpu.pipeline_mode<synchronous>, transform_indices = @transform_3, window_bounds = array<i64: 48, 1024>}, {pipeline_mode = #tpu.pipeline_mode<synchronous>, transform_indices = @transform_4, window_bounds = array<i64: 1, 1024>}, {pipeline_mode = #tpu.pipeline_mode<synchronous>, transform_indices = @transform_5, window_bounds = array<i64: 1024, 4>}, {pipeline_mode = #tpu.pipeline_mode<synchronous>, transform_indices = @transform_6, window_bounds = array<i64: 1, 4>}, {pipeline_mode = #tpu.pipeline_mode<synchronous>, transform_indices = @transform_7, window_bounds = array<i64: 4, 128>}, {pipeline_mode = #tpu.pipeline_mode<synchronous>, transform_indices = @transform_8, window_bounds = array<i64: 256, 64>}, {pipeline_mode = #tpu.pipeline_mode<synchronous>, transform_indices = @transform_9, window_bounds = array<i64: 2, 64>}, {pipeline_mode = #tpu.pipeline_mode<synchronous>, transform_indices = @transform_10, window_bounds = array<i64: 2, 4>}]} {
    %c0 = arith.constant 0 : index
    %c0_0 = arith.constant 0 : index
    %0 = vector.load %arg1[%c0, %c0_0] : memref<2x16xf32, #tpu.memory_space<vmem>>, vector<2x16xf32>
    %c0_1 = arith.constant 0 : index
    %c0_2 = arith.constant 0 : index
    %1 = vector.load %arg2[%c0_1, %c0_2] : memref<2x32xf32, #tpu.memory_space<vmem>>, vector<2x32xf32>
    %c0_3 = arith.constant 0 : index
    %c0_4 = arith.constant 0 : index
    %2 = vector.load %arg3[%c0_3, %c0_4] : memref<2x32xf32, #tpu.memory_space<vmem>>, vector<2x32xf32>
    %3 = tpu.concatenate %0, %1 in 1 : vector<2x16xf32>, vector<2x32xf32> -> vector<2x48xf32>
    %c0_5 = arith.constant 0 : index
    %c0_6 = arith.constant 0 : index
    %4 = vector.load %arg4[%c0_5, %c0_6] : memref<48x1024xf32, #tpu.memory_space<vmem>>, vector<48x1024xf32>
    %cst = arith.constant dense<0.000000e+00> : vector<2x1024xf32>
    %5 = tpu.matmul %3, %4, %cst {dimension_numbers = #tpu.dot_dimension_numbers<[1], [0], [0], [1], [0, 0, 1, 1], [], []>} : vector<2x48xf32>, vector<48x1024xf32>, vector<2x1024xf32> -> vector<2x1024xf32>
    %c0_7 = arith.constant 0 : index
    %c0_8 = arith.constant 0 : index
    %6 = vector.load %arg5[%c0_7, %c0_8] : memref<1x1024xf32, #tpu.memory_space<vmem>>, vector<1x1024xf32>
    %7 = vector.broadcast %6 : vector<1x1024xf32> to vector<2x1024xf32>
    %8 = arith.addf %5, %7 : vector<2x1024xf32>
    %9 = vector.extract_strided_slice %8 {offsets = [0, 0], sizes = [2, 512], strides = [1, 1]} : vector<2x1024xf32> to vector<2x512xf32>
    %10 = vector.extract_strided_slice %8 {offsets = [0, 512], sizes = [2, 512], strides = [1, 1]} : vector<2x1024xf32> to vector<2x512xf32>
    %11 = arith.addf %9, %10 : vector<2x512xf32>
    %12 = vector.extract_strided_slice %11 {offsets = [0, 0], sizes = [2, 128], strides = [1, 1]} : vector<2x512xf32> to vector<2x128xf32>
    %13 = arith.negf %12 : vector<2x128xf32>
    %14 = math.exp %13 : vector<2x128xf32>
    %cst_9 = arith.constant 1.000000e+00 : f32
    %15 = vector.broadcast %cst_9 : f32 to vector<2x128xf32>
    %16 = arith.addf %15, %14 : vector<2x128xf32>
    %17 = arith.divf %15, %16 : vector<2x128xf32>
    %18 = vector.extract_strided_slice %11 {offsets = [0, 128], sizes = [2, 128], strides = [1, 1]} : vector<2x512xf32> to vector<2x128xf32>
    %19 = arith.negf %18 : vector<2x128xf32>
    %20 = math.exp %19 : vector<2x128xf32>
    %cst_10 = arith.constant 1.000000e+00 : f32
    %21 = vector.broadcast %cst_10 : f32 to vector<2x128xf32>
    %22 = arith.addf %21, %20 : vector<2x128xf32>
    %23 = arith.divf %21, %22 : vector<2x128xf32>
    %24 = vector.extract_strided_slice %11 {offsets = [0, 256], sizes = [2, 128], strides = [1, 1]} : vector<2x512xf32> to vector<2x128xf32>
    %25 = arith.negf %24 : vector<2x128xf32>
    %26 = math.exp %25 : vector<2x128xf32>
    %cst_11 = arith.constant 1.000000e+00 : f32
    %27 = vector.broadcast %cst_11 : f32 to vector<2x128xf32>
    %28 = arith.addf %27, %26 : vector<2x128xf32>
    %29 = arith.divf %27, %28 : vector<2x128xf32>
    %30 = vector.extract_strided_slice %11 {offsets = [0, 384], sizes = [2, 128], strides = [1, 1]} : vector<2x512xf32> to vector<2x128xf32>
    %31 = math.tanh %30 : vector<2x128xf32>
    %32 = tpu.concatenate %2, %2, %2, %2 in 1 : vector<2x32xf32>, vector<2x32xf32>, vector<2x32xf32>, vector<2x32xf32> -> vector<2x128xf32>
    %33 = arith.mulf %32, %23 : vector<2x128xf32>
    %34 = arith.mulf %17, %31 : vector<2x128xf32>
    %35 = arith.addf %33, %34 : vector<2x128xf32>
    %36 = math.tanh %35 : vector<2x128xf32>
    %37 = arith.mulf %29, %36 : vector<2x128xf32>
    %cst_12 = arith.constant 0.000000e+00 : f32
    %38 = vector.broadcast %cst_12 : f32 to vector<2x1024xf32>
    %39 = arith.maximumf %8, %38 : vector<2x1024xf32>
    %c0_13 = arith.constant 0 : index
    %c0_14 = arith.constant 0 : index
    %40 = vector.load %arg6[%c0_13, %c0_14] : memref<1024x4xf32, #tpu.memory_space<vmem>>, vector<1024x4xf32>
    %cst_15 = arith.constant dense<0.000000e+00> : vector<2x4xf32>
    %41 = tpu.matmul %39, %40, %cst_15 {dimension_numbers = #tpu.dot_dimension_numbers<[1], [0], [0], [1], [0, 0, 1, 1], [], []>} : vector<2x1024xf32>, vector<1024x4xf32>, vector<2x4xf32> -> vector<2x4xf32>
    %c0_16 = arith.constant 0 : index
    %c0_17 = arith.constant 0 : index
    %42 = vector.load %arg7[%c0_16, %c0_17] : memref<1x4xf32, #tpu.memory_space<vmem>>, vector<1x4xf32>
    %43 = vector.broadcast %42 : vector<1x4xf32> to vector<2x4xf32>
    %44 = arith.addf %41, %43 : vector<2x4xf32>
    %cst_18 = arith.constant dense<0xFF800000> : vector<2xf32>
    %45 = vector.multi_reduction <maximumf>, %44, %cst_18 [1] : vector<2x4xf32> to vector<2xf32>
    %46 = vector.shape_cast %45 : vector<2xf32> to vector<2x1xf32>
    %47 = vector.broadcast %46 : vector<2x1xf32> to vector<2x4xf32>
    %48 = arith.subf %44, %47 : vector<2x4xf32>
    %49 = math.exp %48 : vector<2x4xf32>
    %cst_19 = arith.constant dense<0.000000e+00> : vector<2xf32>
    %50 = vector.multi_reduction <add>, %49, %cst_19 [1] : vector<2x4xf32> to vector<2xf32>
    %51 = vector.shape_cast %50 : vector<2xf32> to vector<2x1xf32>
    %52 = tpu.reciprocal %51 : vector<2x1xf32> -> vector<2x1xf32>
    %53 = vector.broadcast %52 : vector<2x1xf32> to vector<2x4xf32>
    %54 = arith.mulf %49, %53 : vector<2x4xf32>
    %c0_20 = arith.constant 0 : index
    %c0_21 = arith.constant 0 : index
    %55 = vector.load %arg8[%c0_20, %c0_21] : memref<4x128xf32, #tpu.memory_space<vmem>>, vector<4x128xf32>
    %cst_22 = arith.constant dense<0.000000e+00> : vector<2x128xf32>
    %56 = tpu.matmul %54, %55, %cst_22 {dimension_numbers = #tpu.dot_dimension_numbers<[1], [0], [0], [1], [0, 0, 1, 1], [], []>} : vector<2x4xf32>, vector<4x128xf32>, vector<2x128xf32> -> vector<2x128xf32>
    %57 = arith.mulf %37, %56 : vector<2x128xf32>
    %58 = arith.mulf %35, %56 : vector<2x128xf32>
    %59 = tpu.concatenate %57, %58 in 1 : vector<2x128xf32>, vector<2x128xf32> -> vector<2x256xf32>
    %c0_23 = arith.constant 0 : index
    %c0_24 = arith.constant 0 : index
    %60 = vector.load %arg9[%c0_23, %c0_24] : memref<256x64xf32, #tpu.memory_space<vmem>>, vector<256x64xf32>
    %cst_25 = arith.constant dense<0.000000e+00> : vector<2x64xf32>
    %61 = tpu.matmul %59, %60, %cst_25 {dimension_numbers = #tpu.dot_dimension_numbers<[1], [0], [0], [1], [0, 0, 1, 1], [], []>} : vector<2x256xf32>, vector<256x64xf32>, vector<2x64xf32> -> vector<2x64xf32>
    %c0_26 = arith.constant 0 : index
    %c0_27 = arith.constant 0 : index
    %62 = vector.load %arg10[%c0_26, %c0_27] : memref<2x64xf32, #tpu.memory_space<vmem>>, vector<2x64xf32>
    tpu.vector_store %arg10[%c0_26, %c0_27], %61 {strides = array<i32>} : memref<2x64xf32, #tpu.memory_space<vmem>>, vector<2x64xf32>,
    %c0_28 = arith.constant 0 : index
    %c0_29 = arith.constant 0 : index
    %63 = vector.load %arg11[%c0_28, %c0_29] : memref<2x4xf32, #tpu.memory_space<vmem>>, vector<2x4xf32>
    tpu.vector_store %arg11[%c0_28, %c0_29], %54 {strides = array<i32>} : memref<2x4xf32, #tpu.memory_space<vmem>>, vector<2x4xf32>,
    return
  }
  func.func @transform_0(%arg0: i32) -> (i32, i32) {
    %c0_i32 = arith.constant 0 : i32
    %c0_i32_0 = arith.constant 0 : i32
    %c0_i32_1 = arith.constant 0 : i32
    return %c0_i32, %c0_i32_0 : i32, i32
  }
  func.func @transform_1(%arg0: i32) -> (i32, i32) {
    %c0_i32 = arith.constant 0 : i32
    %c0_i32_0 = arith.constant 0 : i32
    %c0_i32_1 = arith.constant 0 : i32
    return %c0_i32, %c0_i32_0 : i32, i32
  }
  func.func @transform_2(%arg0: i32) -> (i32, i32) {
    %c0_i32 = arith.constant 0 : i32
    %c0_i32_0 = arith.constant 0 : i32
    %c0_i32_1 = arith.constant 0 : i32
    return %c0_i32, %c0_i32_0 : i32, i32
  }
  func.func @transform_3(%arg0: i32) -> (i32, i32) {
    %c0_i32 = arith.constant 0 : i32
    %c0_i32_0 = arith.constant 0 : i32
    %c0_i32_1 = arith.constant 0 : i32
    return %c0_i32, %c0_i32_0 : i32, i32
  }
  func.func @transform_4(%arg0: i32) -> (i32, i32) {
    %c0_i32 = arith.constant 0 : i32
    %c0_i32_0 = arith.constant 0 : i32
    %c0_i32_1 = arith.constant 0 : i32
    return %c0_i32, %c0_i32_0 : i32, i32
  }
  func.func @transform_5(%arg0: i32) -> (i32, i32) {
    %c0_i32 = arith.constant 0 : i32
    %c0_i32_0 = arith.constant 0 : i32
    %c0_i32_1 = arith.constant 0 : i32
    return %c0_i32, %c0_i32_0 : i32, i32
  }
  func.func @transform_6(%arg0: i32) -> (i32, i32) {
    %c0_i32 = arith.constant 0 : i32
    %c0_i32_0 = arith.constant 0 : i32
    %c0_i32_1 = arith.constant 0 : i32
    return %c0_i32, %c0_i32_0 : i32, i32
  }
  func.func @transform_7(%arg0: i32) -> (i32, i32) {
    %c0_i32 = arith.constant 0 : i32
    %c0_i32_0 = arith.constant 0 : i32
    %c0_i32_1 = arith.constant 0 : i32
    return %c0_i32, %c0_i32_0 : i32, i32
  }
  func.func @transform_8(%arg0: i32) -> (i32, i32) {
    %c0_i32 = arith.constant 0 : i32
    %c0_i32_0 = arith.constant 0 : i32
    %c0_i32_1 = arith.constant 0 : i32
    return %c0_i32, %c0_i32_0 : i32, i32
  }
  func.func @transform_9(%arg0: i32) -> (i32, i32) {
    %c0_i32 = arith.constant 0 : i32
    %c0_i32_0 = arith.constant 0 : i32
    %c0_i32_1 = arith.constant 0 : i32
    return %c0_i32, %c0_i32_0 : i32, i32
  }
  func.func @transform_10(%arg0: i32) -> (i32, i32) {
    %c0_i32 = arith.constant 0 : i32
    %c0_i32_0 = arith.constant 0 : i32
    %c0_i32_1 = arith.constant 0 : i32
    return %c0_i32, %c0_i32_0 : i32, i32
  }
}

</mosaic_0001>

<llo_original>
// kernel: tpu_custom_call.1
$region0: #{tpu_custom_call.1}
  #allocation0 [shape = 'u32[]', space=smem, size = 0x4, offset = 0x4, fixed_abs, tag = 'smem constant byte address 0x4 - core index']
  #allocation1 [shape = 'u32[72,128]{1,0:T(1,128)}', space=vmem, size = 0x9000, scoped, tag = 'internal scratch']
  %s0 = inlined_call_operand.vmem [shape: f32[2,16], index: 0, kind: input, shape index: {}]
  %s1 = inlined_call_operand.vmem [shape: f32[2,32], index: 1, kind: input, shape index: {}]
  %s2 = inlined_call_operand.vmem [shape: f32[2,32], index: 2, kind: input, shape index: {}]
  %s3 = inlined_call_operand.vmem [shape: f32[48,1024], index: 3, kind: input, shape index: {}]
  %s4 = inlined_call_operand.vmem [shape: f32[1,1024], index: 4, kind: input, shape index: {}]
  %s5 = inlined_call_operand.vmem [shape: f32[1024,4], index: 5, kind: input, shape index: {}]
  %s6 = inlined_call_operand.vmem [shape: f32[1,4], index: 6, kind: input, shape index: {}]
  %s7 = inlined_call_operand.vmem [shape: f32[4,128], index: 7, kind: input, shape index: {}]
  %s8 = inlined_call_operand.vmem [shape: f32[256,64], index: 8, kind: input, shape index: {}]
  %s9 = inlined_call_operand.hbm [shape: f32[2,64], index: 9, kind: output, shape index: {0}]
  %s10 = inlined_call_operand.hbm [shape: f32[2,4], index: 10, kind: output, shape index: {1}]
  %11 = xla_tuple %s9, %s10
  %s12 = sld [smem:[#allocation0]]
  $region54: #{tpu_custom_call.1} parent=0
    _
  %s14 = ssub.s32 1, %s12
  %s15 = scalar_select 0, %s14, %s12
  $region1: #{tpu_custom_call.1} parent=0
    #allocation2 [shape = 'u8[1024]{0}', space=vmem, size = 0x400, scoped, tag = 'output window, operand 0, single buffered']
    #allocation3 [shape = 's32[1]{0}', space=sflag, size = 0x4, scoped, tag = 'scoped memory for tpu_custom_call.1']
    #allocation4 [shape = 'u8[1024]{0}', space=vmem, size = 0x400, scoped, tag = 'output window, operand 1, single buffered']
    #allocation5 [shape = 's32[1]{0}', space=sflag, size = 0x4, scoped, tag = 'scoped memory for tpu_custom_call.1']
    %16 = vsyncpa [#allocation3], 0
    %17 = vsyncpa [#allocation5], 0
    // Predicated region
    $region2: #{tpu_custom_call.1} parent=1 // pred_check
      _
    $region3: #{tpu_custom_call.1} parent=1 // pred_check_branch
      %19 = sbr.rel (0) target = $region5
    $region4: #{tpu_custom_call.1} parent=1 // pred_region
      _
    $region5: #{tpu_custom_call.1} parent=1 // pred_fallthru
      _
    // Predicated region
    $region6: #{tpu_custom_call.1} parent=1 // pred_check
      _
    $region7: #{tpu_custom_call.1} parent=1 // pred_check_branch
      %21 = sbr.rel (0) target = $region9
    $region8: #{tpu_custom_call.1} parent=1 // pred_region
      _
    $region9: #{tpu_custom_call.1} parent=1 // pred_fallthru
      _
    // Predicated region
    $region10: #{tpu_custom_call.1} parent=1 // pred_check
      _
    $region11: #{tpu_custom_call.1} parent=1 // pred_check_branch
      %23 = sbr.rel (0) target = $region13
    $region12: #{tpu_custom_call.1} parent=1 // pred_region
      _
    $region13: #{tpu_custom_call.1} parent=1 // pred_fallthru
      _
    // Predicated region
    $region14: #{tpu_custom_call.1} parent=1 // pred_check
      _
    $region15: #{tpu_custom_call.1} parent=1 // pred_check_branch
      %25 = sbr.rel (0) target = $region17
    $region16: #{tpu_custom_call.1} parent=1 // pred_region
      _
    $region17: #{tpu_custom_call.1} parent=1 // pred_fallthru
      _
    // Predicated region
    $region18: #{tpu_custom_call.1} parent=1 // pred_check
      _
    $region19: #{tpu_custom_call.1} parent=1 // pred_check_branch
      %27 = sbr.rel (0) target = $region21
    $region20: #{tpu_custom_call.1} parent=1 // pred_region
      _
    $region21: #{tpu_custom_call.1} parent=1 // pred_fallthru
      _
    // Predicated region
    $region22: #{tpu_custom_call.1} parent=1 // pred_check
      _
    $region23: #{tpu_custom_call.1} parent=1 // pred_check_branch
      %29 = sbr.rel (0) target = $region25
    $region24: #{tpu_custom_call.1} parent=1 // pred_region
      _
    $region25: #{tpu_custom_call.1} parent=1 // pred_fallthru
      _
    // Predicated region
    $region26: #{tpu_custom_call.1} parent=1 // pred_check
      _
    $region27: #{tpu_custom_call.1} parent=1 // pred_check_branch
      %31 = sbr.rel (0) target = $region29
    $region28: #{tpu_custom_call.1} parent=1 // pred_region
      _
    $region29: #{tpu_custom_call.1} parent=1 // pred_fallthru
      _
    // Predicated region
    $region30: #{tpu_custom_call.1} parent=1 // pred_check
      _
    $region31: #{tpu_custom_call.1} parent=1 // pred_check_branch
      %33 = sbr.rel (0) target = $region33
    $region32: #{tpu_custom_call.1} parent=1 // pred_region
      _
    $region33: #{tpu_custom_call.1} parent=1 // pred_fallthru
      _
    // Predicated region
    $region34: #{tpu_custom_call.1} parent=1 // pred_check
      _
    $region35: #{tpu_custom_call.1} parent=1 // pred_check_branch
      %35 = sbr.rel (0) target = $region37
    $region36: #{tpu_custom_call.1} parent=1 // pred_region
      _
    $region37: #{tpu_custom_call.1} parent=1 // pred_fallthru
      _
    %v36 = vld [vmem:[%s0] sm:$0x3]
    %v37 = vld [vmem:[%s1] sm:$0x3]
    %v38 = vld [vmem:[%s2] sm:$0x3]
    %40 = vrot.lane.b32.xlu0 %v37, 16
    %v41 = vpop.permute.xlu0 %40
    %vm43 = vcmask 130048
    %v44 = vsel %vm43, %v36, %v41
    %v45 = vld [vmem:[%s3] sm:$0xff]
    %v46 = vld [vmem:[%s3 + $0x8] sm:$0xff]
    %v47 = vld [vmem:[%s3 + $0x10] sm:$0xff]
    %v48 = vld [vmem:[%s3 + $0x18] sm:$0xff]
    %v49 = vld [vmem:[%s3 + $0x20] sm:$0xff]
    %v50 = vld [vmem:[%s3 + $0x28] sm:$0xff]
    %v51 = vld [vmem:[%s3 + $0x30] sm:$0xff]
    %v52 = vld [vmem:[%s3 + $0x38] sm:$0xff]
    %v53 = vld [vmem:[%s3 + $0x40] sm:$0xff]
    %v54 = vld [vmem:[%s3 + $0x48] sm:$0xff]
    %v55 = vld [vmem:[%s3 + $0x50] sm:$0xff]
    %v56 = vld [vmem:[%s3 + $0x58] sm:$0xff]
    %v57 = vld [vmem:[%s3 + $0x60] sm:$0xff]
    %v58 = vld [vmem:[%s3 + $0x68] sm:$0xff]
    %v59 = vld [vmem:[%s3 + $0x70] sm:$0xff]
    %v60 = vld [vmem:[%s3 + $0x78] sm:$0xff]
    %v61 = vld [vmem:[%s3 + $0x80] sm:$0xff]
    %v62 = vld [vmem:[%s3 + $0x88] sm:$0xff]
    %v63 = vld [vmem:[%s3 + $0x90] sm:$0xff]
    %v64 = vld [vmem:[%s3 + $0x98] sm:$0xff]
    %v65 = vld [vmem:[%s3 + $0xa0] sm:$0xff]
    %v66 = vld [vmem:[%s3 + $0xa8] sm:$0xff]
    %v67 = vld [vmem:[%s3 + $0xb0] sm:$0xff]
    %v68 = vld [vmem:[%s3 + $0xb8] sm:$0xff]
    %v69 = vld [vmem:[%s3 + $0xc0] sm:$0xff]
    %v70 = vld [vmem:[%s3 + $0xc8] sm:$0xff]
    %v71 = vld [vmem:[%s3 + $0xd0] sm:$0xff]
    %v72 = vld [vmem:[%s3 + $0xd8] sm:$0xff]
    %v73 = vld [vmem:[%s3 + $0xe0] sm:$0xff]
    %v74 = vld [vmem:[%s3 + $0xe8] sm:$0xff]
    %v75 = vld [vmem:[%s3 + $0xf0] sm:$0xff]
    %v76 = vld [vmem:[%s3 + $0xf8] sm:$0xff]
    %v77 = vld [vmem:[%s3 + $0x100] sm:$0xff]
    %v78 = vld [vmem:[%s3 + $0x108] sm:$0xff]
    %v79 = vld [vmem:[%s3 + $0x110] sm:$0xff]
    %v80 = vld [vmem:[%s3 + $0x118] sm:$0xff]
    %v81 = vld [vmem:[%s3 + $0x120] sm:$0xff]
    %v82 = vld [vmem:[%s3 + $0x128] sm:$0xff]
    %v83 = vld [vmem:[%s3 + $0x130] sm:$0xff]
    %v84 = vld [vmem:[%s3 + $0x138] sm:$0xff]
    %v85 = vld [vmem:[%s3 + $0x140] sm:$0xff]
    %v86 = vld [vmem:[%s3 + $0x148] sm:$0xff]
    %v87 = vld [vmem:[%s3 + $0x150] sm:$0xff]
    %v88 = vld [vmem:[%s3 + $0x158] sm:$0xff]
    %v89 = vld [vmem:[%s3 + $0x160] sm:$0xff]
    %v90 = vld [vmem:[%s3 + $0x168] sm:$0xff]
    %v91 = vld [vmem:[%s3 + $0x170] sm:$0xff]
    %v92 = vld [vmem:[%s3 + $0x178] sm:$0xff]
    %v93 = vld [vmem:[%s4] sm:$0xff]
    %v95 = vperm.slane %v93, 0
    %v96 = vperm.slane %v93, 1
    %v97 = vperm.slane %v93, 2
    %v98 = vperm.slane %v93, 3
    %v99 = vperm.slane %v93, 4
    %v100 = vperm.slane %v93, 5
    %v101 = vperm.slane %v93, 6
    %v102 = vperm.slane %v93, 7
    %vm111 = vcmask 392192
    %v113 = vsel %vm111, %v44, 0
    %115 = vmatpush.msra.mxu0 0.0
    %116 = vmatpush.msra.mxu0 0.0
    %117 = vmatpush.msra.mxu0 0.0
    %118 = vmatpush.msra.mxu0 0.0
    %119 = vmatpush.msra.mxu0 0.0
    %120 = vmatpush.msra.mxu0 0.0
    %121 = vmatpush.msra.mxu0 0.0
    %122 = vmatpush.msra.mxu0 0.0
    %123 = vmatpush.msra.mxu0 0.0
    %124 = vmatpush.msra.mxu0 0.0
    %125 = vmatpush.msra.mxu0 %v85
    %126 = vmatpush.msra.mxu0 %v77
    %127 = vmatpush.msra.mxu0 %v69
    %128 = vmatpush.msra.mxu0 %v61
    %129 = vmatpush.msra.mxu0 %v53
    %130 = vmatpush.msra.mxu0 %v45
    %131 = vmatmul.f32.gmra.mxu0 %v113
    %v132 = vpop.f32.mrf.mxu0
    %v133 = vadd.f32 %v95, %v132
    %134 = vdwg.mxu0
    %135 = vmatpush.msra.mxu0 0.0
    %136 = vmatpush.msra.mxu0 0.0
    %137 = vmatpush.msra.mxu0 0.0
    %138 = vmatpush.msra.mxu0 0.0
    %139 = vmatpush.msra.mxu0 0.0
    %140 = vmatpush.msra.mxu0 0.0
    %141 = vmatpush.msra.mxu0 0.0
    %142 = vmatpush.msra.mxu0 0.0
    %143 = vmatpush.msra.mxu0 0.0
    %144 = vmatpush.msra.mxu0 0.0
    %145 = vmatpush.msra.mxu0 %v86
    %146 = vmatpush.msra.mxu0 %v78
    %147 = vmatpush.msra.mxu0 %v70
    %148 = vmatpush.msra.mxu0 %v62
    %149 = vmatpush.msra.mxu0 %v54
    %150 = vmatpush.msra.mxu0 %v46
    %151 = vmatmul.f32.gmra.mxu0 %v113
    %v152 = vpop.f32.mrf.mxu0
    %v153 = vadd.f32 %v96, %v152
    %154 = vdwg.mxu0
    %155 = vmatpush.msra.mxu0 0.0
    %156 = vmatpush.msra.mxu0 0.0
    %157 = vmatpush.msra.mxu0 0.0
    %158 = vmatpush.msra.mxu0 0.0
    %159 = vmatpush.msra.mxu0 0.0
    %160 = vmatpush.msra.mxu0 0.0
    %161 = vmatpush.msra.mxu0 0.0
    %162 = vmatpush.msra.mxu0 0.0
    %163 = vmatpush.msra.mxu0 0.0
    %164 = vmatpush.msra.mxu0 0.0
    %165 = vmatpush.msra.mxu0 %v87
    %166 = vmatpush.msra.mxu0 %v79
    %167 = vmatpush.msra.mxu0 %v71
    %168 = vmatpush.msra.mxu0 %v63
    %169 = vmatpush.msra.mxu0 %v55
    %170 = vmatpush.msra.mxu0 %v47
    %171 = vmatmul.f32.gmra.mxu0 %v113
    %v172 = vpop.f32.mrf.mxu0
    %v173 = vadd.f32 %v97, %v172
    %174 = vdwg.mxu0
    %175 = vmatpush.msra.mxu0 0.0
    %176 = vmatpush.msra.mxu0 0.0
    %177 = vmatpush.msra.mxu0 0.0
    %178 = vmatpush.msra.mxu0 0.0
    %179 = vmatpush.msra.mxu0 0.0
    %180 = vmatpush.msra.mxu0 0.0
    %181 = vmatpush.msra.mxu0 0.0
    %182 = vmatpush.msra.mxu0 0.0
    %183 = vmatpush.msra.mxu0 0.0
    %184 = vmatpush.msra.mxu0 0.0
    %185 = vmatpush.msra.mxu0 %v88
    %186 = vmatpush.msra.mxu0 %v80
    %187 = vmatpush.msra.mxu0 %v72
    %188 = vmatpush.msra.mxu0 %v64
    %189 = vmatpush.msra.mxu0 %v56
    %190 = vmatpush.msra.mxu0 %v48
    %191 = vmatmul.f32.gmra.mxu0 %v113
    %v192 = vpop.f32.mrf.mxu0
    %v193 = vadd.f32 %v98, %v192
    %194 = vdwg.mxu0
    %195 = vmatpush.msra.mxu0 0.0
    %196 = vmatpush.msra.mxu0 0.0
    %197 = vmatpush.msra.mxu0 0.0
    %198 = vmatpush.msra.mxu0 0.0
    %199 = vmatpush.msra.mxu0 0.0
    %200 = vmatpush.msra.mxu0 0.0
    %201 = vmatpush.msra.mxu0 0.0
    %202 = vmatpush.msra.mxu0 0.0
    %203 = vmatpush.msra.mxu0 0.0
    %204 = vmatpush.msra.mxu0 0.0
    %205 = vmatpush.msra.mxu0 %v89
    %206 = vmatpush.msra.mxu0 %v81
    %207 = vmatpush.msra.mxu0 %v73
    %208 = vmatpush.msra.mxu0 %v65
    %209 = vmatpush.msra.mxu0 %v57
    %210 = vmatpush.msra.mxu0 %v49
    %211 = vmatmul.f32.gmra.mxu0 %v113
    %v212 = vpop.f32.mrf.mxu0
    %v213 = vadd.f32 %v99, %v212
    %214 = vdwg.mxu0
    %215 = vmatpush.msra.mxu0 0.0
    %216 = vmatpush.msra.mxu0 0.0
    %217 = vmatpush.msra.mxu0 0.0
    %218 = vmatpush.msra.mxu0 0.0
    %219 = vmatpush.msra.mxu0 0.0
    %220 = vmatpush.msra.mxu0 0.0
    %221 = vmatpush.msra.mxu0 0.0
    %222 = vmatpush.msra.mxu0 0.0
    %223 = vmatpush.msra.mxu0 0.0
    %224 = vmatpush.msra.mxu0 0.0
    %225 = vmatpush.msra.mxu0 %v90
    %226 = vmatpush.msra.mxu0 %v82
    %227 = vmatpush.msra.mxu0 %v74
    %228 = vmatpush.msra.mxu0 %v66
    %229 = vmatpush.msra.mxu0 %v58
    %230 = vmatpush.msra.mxu0 %v50
    %231 = vmatmul.f32.gmra.mxu0 %v113
    %v232 = vpop.f32.mrf.mxu0
    %v233 = vadd.f32 %v100, %v232
    %234 = vdwg.mxu0
    %235 = vmatpush.msra.mxu0 0.0
    %236 = vmatpush.msra.mxu0 0.0
    %237 = vmatpush.msra.mxu0 0.0
    %238 = vmatpush.msra.mxu0 0.0
    %239 = vmatpush.msra.mxu0 0.0
    %240 = vmatpush.msra.mxu0 0.0
    %241 = vmatpush.msra.mxu0 0.0
    %242 = vmatpush.msra.mxu0 0.0
    %243 = vmatpush.msra.mxu0 0.0
    %244 = vmatpush.msra.mxu0 0.0
    %245 = vmatpush.msra.mxu0 %v91
    %246 = vmatpush.msra.mxu0 %v83
    %247 = vmatpush.msra.mxu0 %v75
    %248 = vmatpush.msra.mxu0 %v67
    %249 = vmatpush.msra.mxu0 %v59
    %250 = vmatpush.msra.mxu0 %v51
    %251 = vmatmul.f32.gmra.mxu0 %v113
    %v252 = vpop.f32.mrf.mxu0
    %v253 = vadd.f32 %v101, %v252
    %254 = vdwg.mxu0
    %255 = vmatpush.msra.mxu0 0.0
    %256 = vmatpush.msra.mxu0 0.0
    %257 = vmatpush.msra.mxu0 0.0
    %258 = vmatpush.msra.mxu0 0.0
    %259 = vmatpush.msra.mxu0 0.0
    %260 = vmatpush.msra.mxu0 0.0
    %261 = vmatpush.msra.mxu0 0.0
    %262 = vmatpush.msra.mxu0 0.0
    %263 = vmatpush.msra.mxu0 0.0
    %264 = vmatpush.msra.mxu0 0.0
    %265 = vmatpush.msra.mxu0 %v92
    %266 = vmatpush.msra.mxu0 %v84
    %267 = vmatpush.msra.mxu0 %v76
    %268 = vmatpush.msra.mxu0 %v68
    %269 = vmatpush.msra.mxu0 %v60
    %270 = vmatpush.msra.mxu0 %v52
    %271 = vmatmul.f32.gmra.mxu0 %v113
    %v272 = vpop.f32.mrf.mxu0
    %v273 = vadd.f32 %v102, %v272
    %274 = vdwg.mxu0
    %v275 = vadd.f32 %v133, %v213
    %v276 = vadd.f32 %v153, %v233
    %v277 = vadd.f32 %v173, %v253
    %v278 = vadd.f32 %v193, %v273
    %v279 = vxor.u32 %v275, 2147483648
    %v280 = vmul.f32 %v279, 1.442695
    %v281 = vpow.pop %v280
    %v282 = vadd.f32 %v281, 1.0
    %v283 = vrcp.pop %v282
    %v284 = vmul.f32 %v282, %v283
    %v285 = vsub.f32 1.0, %v284
    %v286 = vmul.f32 %v283, %v285
    %v287 = vadd.f32 %v283, %v286
    %vm288 = vweird.f32 %v282
    %vm289 = vweird.f32 %v283
    %vm290 = vmor %vm288, %vm289
    %v291 = vsel %vm290, %v283, %v287
    %v292 = vand.u32 2147483647, %v282
    %vm293 = vcmp.eq.f32.partialorder %v292, 8.507059e+37
    %v294 = vand.u32 %v282, 2147483648
    %v295 = vor.u32 1.1754944e-38, %v294
    %v296 = vsel %vm293, %v295, %v291
    %v297 = vmul.f32 1.0, %v296
    %v298 = vxor.u32 %v276, 2147483648
    %v299 = vmul.f32 %v298, 1.442695
    %v300 = vpow.pop %v299
    %v301 = vadd.f32 %v300, 1.0
    %v302 = vrcp.pop %v301
    %v303 = vmul.f32 %v301, %v302
    %v304 = vsub.f32 1.0, %v303
    %v305 = vmul.f32 %v302, %v304
    %v306 = vadd.f32 %v302, %v305
    %vm307 = vweird.f32 %v301
    %vm308 = vweird.f32 %v302
    %vm309 = vmor %vm307, %vm308
    %v310 = vsel %vm309, %v302, %v306
    %v311 = vand.u32 2147483647, %v301
    %vm312 = vcmp.eq.f32.partialorder %v311, 8.507059e+37
    %v313 = vand.u32 %v301, 2147483648
    %v314 = vor.u32 1.1754944e-38, %v313
    %v315 = vsel %vm312, %v314, %v310
    %v316 = vmul.f32 1.0, %v315
    %v317 = vxor.u32 %v277, 2147483648
    %v318 = vmul.f32 %v317, 1.442695
    %v319 = vpow.pop %v318
    %v320 = vadd.f32 %v319, 1.0
    %v321 = vrcp.pop %v320
    %v322 = vmul.f32 %v320, %v321
    %v323 = vsub.f32 1.0, %v322
    %v324 = vmul.f32 %v321, %v323
    %v325 = vadd.f32 %v321, %v324
    %vm326 = vweird.f32 %v320
    %vm327 = vweird.f32 %v321
    %vm328 = vmor %vm326, %vm327
    %v329 = vsel %vm328, %v321, %v325
    %v330 = vand.u32 2147483647, %v320
    %vm331 = vcmp.eq.f32.partialorder %v330, 8.507059e+37
    %v332 = vand.u32 %v320, 2147483648
    %v333 = vor.u32 1.1754944e-38, %v332
    %v334 = vsel %vm331, %v333, %v329
    %v335 = vmul.f32 1.0, %v334
    %v336 = vtanh.pop %v278
    %338 = vrot.lane.b32.xlu0 %v38, 32
    %v339 = vpop.permute.xlu0 %338
    %341 = vrot.lane.b32.xlu0 %v38, 64
    %v342 = vpop.permute.xlu0 %341
    %344 = vrot.lane.b32.xlu0 %v38, 96
    %v345 = vpop.permute.xlu0 %344
    %vm347 = vcmask 261120
    %v348 = vsel %vm347, %v38, %v339
    %vm349 = vcmask 523264
    %v350 = vsel %vm349, %v348, %v342
    %vm351 = vcmask 785408
    %v352 = vsel %vm351, %v350, %v345
    %v353 = vmul.f32 %v352, %v316
    %v354 = vmul.f32 %v297, %v336
    %v355 = vadd.f32 %v353, %v354
    %v356 = vtanh.pop %v355
    %v357 = vmul.f32 %v335, %v356
    %v358 = vmax.f32 %v133, 0.0
    %v359 = vmax.f32 %v153, 0.0
    %v360 = vmax.f32 %v173, 0.0
    %v361 = vmax.f32 %v193, 0.0
    %v362 = vmax.f32 %v213, 0.0
    %v363 = vmax.f32 %v233, 0.0
    %v364 = vmax.f32 %v253, 0.0
    %v365 = vmax.f32 %v273, 0.0
    %v366 = vld [vmem:[%s5] sm:$0xff]
    %v367 = vld [vmem:[%s5 + $0x8] sm:$0xff]
    %v368 = vld [vmem:[%s5 + $0x10] sm:$0xff]
    %v369 = vld [vmem:[%s5 + $0x18] sm:$0xff]
    %v370 = vld [vmem:[%s5 + $0x20] sm:$0xff]
    %v371 = vld [vmem:[%s5 + $0x28] sm:$0xff]
    %v372 = vld [vmem:[%s5 + $0x30] sm:$0xff]
    %v373 = vld [vmem:[%s5 + $0x38] sm:$0xff]
    %v374 = vld [vmem:[%s5 + $0x40] sm:$0xff]
    %v375 = vld [vmem:[%s5 + $0x48] sm:$0xff]
    %v376 = vld [vmem:[%s5 + $0x50] sm:$0xff]
    %v377 = vld [vmem:[%s5 + $0x58] sm:$0xff]
    %v378 = vld [vmem:[%s5 + $0x60] sm:$0xff]
    %v379 = vld [vmem:[%s5 + $0x68] sm:$0xff]
    %v380 = vld [vmem:[%s5 + $0x70] sm:$0xff]
    %v381 = vld [vmem:[%s5 + $0x78] sm:$0xff]
    %v382 = vld [vmem:[%s5 + $0x80] sm:$0xff]
    %v383 = vld [vmem:[%s5 + $0x88] sm:$0xff]
    %v384 = vld [vmem:[%s5 + $0x90] sm:$0xff]
    %v385 = vld [vmem:[%s5 + $0x98] sm:$0xff]
    %v386 = vld [vmem:[%s5 + $0xa0] sm:$0xff]
    %v387 = vld [vmem:[%s5 + $0xa8] sm:$0xff]
    %v388 = vld [vmem:[%s5 + $0xb0] sm:$0xff]
    %v389 = vld [vmem:[%s5 + $0xb8] sm:$0xff]
    %v390 = vld [vmem:[%s5 + $0xc0] sm:$0xff]
    %v391 = vld [vmem:[%s5 + $0xc8] sm:$0xff]
    %v392 = vld [vmem:[%s5 + $0xd0] sm:$0xff]
    %v393 = vld [vmem:[%s5 + $0xd8] sm:$0xff]
    %v394 = vld [vmem:[%s5 + $0xe0] sm:$0xff]
    %v395 = vld [vmem:[%s5 + $0xe8] sm:$0xff]
    %v396 = vld [vmem:[%s5 + $0xf0] sm:$0xff]
    %v397 = vld [vmem:[%s5 + $0xf8] sm:$0xff]
    %v398 = vld [vmem:[%s5 + $0x100] sm:$0xff]
    %v399 = vld [vmem:[%s5 + $0x108] sm:$0xff]
    %v400 = vld [vmem:[%s5 + $0x110] sm:$0xff]
    %v401 = vld [vmem:[%s5 + $0x118] sm:$0xff]
    %v402 = vld [vmem:[%s5 + $0x120] sm:$0xff]
    %v403 = vld [vmem:[%s5 + $0x128] sm:$0xff]
    %v404 = vld [vmem:[%s5 + $0x130] sm:$0xff]
    %v405 = vld [vmem:[%s5 + $0x138] sm:$0xff]
    %v406 = vld [vmem:[%s5 + $0x140] sm:$0xff]
    %v407 = vld [vmem:[%s5 + $0x148] sm:$0xff]
    %v408 = vld [vmem:[%s5 + $0x150] sm:$0xff]
    %v409 = vld [vmem:[%s5 + $0x158] sm:$0xff]
    %v410 = vld [vmem:[%s5 + $0x160] sm:$0xff]
    %v411 = vld [vmem:[%s5 + $0x168] sm:$0xff]
    %v412 = vld [vmem:[%s5 + $0x170] sm:$0xff]
    %v413 = vld [vmem:[%s5 + $0x178] sm:$0xff]
    %v414 = vld [vmem:[%s5 + $0x180] sm:$0xff]
    %v415 = vld [vmem:[%s5 + $0x188] sm:$0xff]
    %v416 = vld [vmem:[%s5 + $0x190] sm:$0xff]
    %v417 = vld [vmem:[%s5 + $0x198] sm:$0xff]
    %v418 = vld [vmem:[%s5 + $0x1a0] sm:$0xff]
    %v419 = vld [vmem:[%s5 + $0x1a8] sm:$0xff]
    %v420 = vld [vmem:[%s5 + $0x1b0] sm:$0xff]
    %v421 = vld [vmem:[%s5 + $0x1b8] sm:$0xff]
    %v422 = vld [vmem:[%s5 + $0x1c0] sm:$0xff]
    %v423 = vld [vmem:[%s5 + $0x1c8] sm:$0xff]
    %v424 = vld [vmem:[%s5 + $0x1d0] sm:$0xff]
    %v425 = vld [vmem:[%s5 + $0x1d8] sm:$0xff]
    %v426 = vld [vmem:[%s5 + $0x1e0] sm:$0xff]
    %v427 = vld [vmem:[%s5 + $0x1e8] sm:$0xff]
    %v428 = vld [vmem:[%s5 + $0x1f0] sm:$0xff]
    %v429 = vld [vmem:[%s5 + $0x1f8] sm:$0xff]
    %v430 = vld [vmem:[%s5 + $0x200] sm:$0xff]
    %v431 = vld [vmem:[%s5 + $0x208] sm:$0xff]
    %v432 = vld [vmem:[%s5 + $0x210] sm:$0xff]
    %v433 = vld [vmem:[%s5 + $0x218] sm:$0xff]
    %v434 = vld [vmem:[%s5 + $0x220] sm:$0xff]
    %v435 = vld [vmem:[%s5 + $0x228] sm:$0xff]
    %v436 = vld [vmem:[%s5 + $0x230] sm:$0xff]
    %v437 = vld [vmem:[%s5 + $0x238] sm:$0xff]
    %v438 = vld [vmem:[%s5 + $0x240] sm:$0xff]
    %v439 = vld [vmem:[%s5 + $0x248] sm:$0xff]
    %v440 = vld [vmem:[%s5 + $0x250] sm:$0xff]
    %v441 = vld [vmem:[%s5 + $0x258] sm:$0xff]
    %v442 = vld [vmem:[%s5 + $0x260] sm:$0xff]
    %v443 = vld [vmem:[%s5 + $0x268] sm:$0xff]
    %v444 = vld [vmem:[%s5 + $0x270] sm:$0xff]
    %v445 = vld [vmem:[%s5 + $0x278] sm:$0xff]
    %v446 = vld [vmem:[%s5 + $0x280] sm:$0xff]
    %v447 = vld [vmem:[%s5 + $0x288] sm:$0xff]
    %v448 = vld [vmem:[%s5 + $0x290] sm:$0xff]
    %v449 = vld [vmem:[%s5 + $0x298] sm:$0xff]
    %v450 = vld [vmem:[%s5 + $0x2a0] sm:$0xff]
    %v451 = vld [vmem:[%s5 + $0x2a8] sm:$0xff]
    %v452 = vld [vmem:[%s5 + $0x2b0] sm:$0xff]
    %v453 = vld [vmem:[%s5 + $0x2b8] sm:$0xff]
    %v454 = vld [vmem:[%s5 + $0x2c0] sm:$0xff]
    %v455 = vld [vmem:[%s5 + $0x2c8] sm:$0xff]
    %v456 = vld [vmem:[%s5 + $0x2d0] sm:$0xff]
    %v457 = vld [vmem:[%s5 + $0x2d8] sm:$0xff]
    %v458 = vld [vmem:[%s5 + $0x2e0] sm:$0xff]
    %v459 = vld [vmem:[%s5 + $0x2e8] sm:$0xff]
    %v460 = vld [vmem:[%s5 + $0x2f0] sm:$0xff]
    %v461 = vld [vmem:[%s5 + $0x2f8] sm:$0xff]
    %v462 = vld [vmem:[%s5 + $0x300] sm:$0xff]
    %v463 = vld [vmem:[%s5 + $0x308] sm:$0xff]
    %v464 = vld [vmem:[%s5 + $0x310] sm:$0xff]
    %v465 = vld [vmem:[%s5 + $0x318] sm:$0xff]
    %v466 = vld [vmem:[%s5 + $0x320] sm:$0xff]
    %v467 = vld [vmem:[%s5 + $0x328] sm:$0xff]
    %v468 = vld [vmem:[%s5 + $0x330] sm:$0xff]
    %v469 = vld [vmem:[%s5 + $0x338] sm:$0xff]
    %v470 = vld [vmem:[%s5 + $0x340] sm:$0xff]
    %v471 = vld [vmem:[%s5 + $0x348] sm:$0xff]
    %v472 = vld [vmem:[%s5 + $0x350] sm:$0xff]
    %v473 = vld [vmem:[%s5 + $0x358] sm:$0xff]
    %v474 = vld [vmem:[%s5 + $0x360] sm:$0xff]
    %v475 = vld [vmem:[%s5 + $0x368] sm:$0xff]
    %v476 = vld [vmem:[%s5 + $0x370] sm:$0xff]
    %v477 = vld [vmem:[%s5 + $0x378] sm:$0xff]
    %v478 = vld [vmem:[%s5 + $0x380] sm:$0xff]
    %v479 = vld [vmem:[%s5 + $0x388] sm:$0xff]
    %v480 = vld [vmem:[%s5 + $0x390] sm:$0xff]
    %v481 = vld [vmem:[%s5 + $0x398] sm:$0xff]
    %v482 = vld [vmem:[%s5 + $0x3a0] sm:$0xff]
    %v483 = vld [vmem:[%s5 + $0x3a8] sm:$0xff]
    %v484 = vld [vmem:[%s5 + $0x3b0] sm:$0xff]
    %v485 = vld [vmem:[%s5 + $0x3b8] sm:$0xff]
    %v486 = vld [vmem:[%s5 + $0x3c0] sm:$0xff]
    %v487 = vld [vmem:[%s5 + $0x3c8] sm:$0xff]
    %v488 = vld [vmem:[%s5 + $0x3d0] sm:$0xff]
    %v489 = vld [vmem:[%s5 + $0x3d8] sm:$0xff]
    %v490 = vld [vmem:[%s5 + $0x3e0] sm:$0xff]
    %v491 = vld [vmem:[%s5 + $0x3e8] sm:$0xff]
    %v492 = vld [vmem:[%s5 + $0x3f0] sm:$0xff]
    %v493 = vld [vmem:[%s5 + $0x3f8] sm:$0xff]
    %v494 = vld [vmem:[%s6] sm:$0x1]
    %v496 = vperm.slane %v494, 0
    %498 = vmatpush.msra.mxu0 %v381
    %499 = vmatpush.msra.mxu0 %v380
    %500 = vmatpush.msra.mxu0 %v379
    %501 = vmatpush.msra.mxu0 %v378
    %502 = vmatpush.msra.mxu0 %v377
    %503 = vmatpush.msra.mxu0 %v376
    %504 = vmatpush.msra.mxu0 %v375
    %505 = vmatpush.msra.mxu0 %v374
    %506 = vmatpush.msra.mxu0 %v373
    %507 = vmatpush.msra.mxu0 %v372
    %508 = vmatpush.msra.mxu0 %v371
    %509 = vmatpush.msra.mxu0 %v370
    %510 = vmatpush.msra.mxu0 %v369
    %511 = vmatpush.msra.mxu0 %v368
    %512 = vmatpush.msra.mxu0 %v367
    %513 = vmatpush.msra.mxu0 %v366
    %514 = vmatmul.f32.gmra.mxu0 %v358
    %v515 = vpop.f32.mrf.mxu0
    %v516 = vadd.f32 %v496, %v515
    %517 = vdwg.mxu0
    %518 = vmatpush.msra.mxu0 %v397
    %519 = vmatpush.msra.mxu0 %v396
    %520 = vmatpush.msra.mxu0 %v395
    %521 = vmatpush.msra.mxu0 %v394
    %522 = vmatpush.msra.mxu0 %v393
    %523 = vmatpush.msra.mxu0 %v392
    %524 = vmatpush.msra.mxu0 %v391
    %525 = vmatpush.msra.mxu0 %v390
    %526 = vmatpush.msra.mxu0 %v389
    %527 = vmatpush.msra.mxu0 %v388
    %528 = vmatpush.msra.mxu0 %v387
    %529 = vmatpush.msra.mxu0 %v386
    %530 = vmatpush.msra.mxu0 %v385
    %531 = vmatpush.msra.mxu0 %v384
    %532 = vmatpush.msra.mxu0 %v383
    %533 = vmatpush.msra.mxu0 %v382
    %534 = vmatmul.f32.gmra.mxu0 %v359
    %v535 = vpop.f32.mrf.mxu0
    %v536 = vadd.f32 %v516, %v535
    %537 = vdwg.mxu0
    %538 = vmatpush.msra.mxu0 %v413
    %539 = vmatpush.msra.mxu0 %v412
    %540 = vmatpush.msra.mxu0 %v411
    %541 = vmatpush.msra.mxu0 %v410
    %542 = vmatpush.msra.mxu0 %v409
    %543 = vmatpush.msra.mxu0 %v408
    %544 = vmatpush.msra.mxu0 %v407
    %545 = vmatpush.msra.mxu0 %v406
    %546 = vmatpush.msra.mxu0 %v405
    %547 = vmatpush.msra.mxu0 %v404
    %548 = vmatpush.msra.mxu0 %v403
    %549 = vmatpush.msra.mxu0 %v402
    %550 = vmatpush.msra.mxu0 %v401
    %551 = vmatpush.msra.mxu0 %v400
    %552 = vmatpush.msra.mxu0 %v399
    %553 = vmatpush.msra.mxu0 %v398
    %554 = vmatmul.f32.gmra.mxu0 %v360
    %v555 = vpop.f32.mrf.mxu0
    %v556 = vadd.f32 %v536, %v555
    %557 = vdwg.mxu0
    %558 = vmatpush.msra.mxu0 %v429
    %559 = vmatpush.msra.mxu0 %v428
    %560 = vmatpush.msra.mxu0 %v427
    %561 = vmatpush.msra.mxu0 %v426
    %562 = vmatpush.msra.mxu0 %v425
    %563 = vmatpush.msra.mxu0 %v424
    %564 = vmatpush.msra.mxu0 %v423
    %565 = vmatpush.msra.mxu0 %v422
    %566 = vmatpush.msra.mxu0 %v421
    %567 = vmatpush.msra.mxu0 %v420
    %568 = vmatpush.msra.mxu0 %v419
    %569 = vmatpush.msra.mxu0 %v418
    %570 = vmatpush.msra.mxu0 %v417
    %571 = vmatpush.msra.mxu0 %v416
    %572 = vmatpush.msra.mxu0 %v415
    %573 = vmatpush.msra.mxu0 %v414
    %574 = vmatmul.f32.gmra.mxu0 %v361
    %v575 = vpop.f32.mrf.mxu0
    %v576 = vadd.f32 %v556, %v575
    %577 = vdwg.mxu0
    %578 = vmatpush.msra.mxu0 %v445
    %579 = vmatpush.msra.mxu0 %v444
    %580 = vmatpush.msra.mxu0 %v443
    %581 = vmatpush.msra.mxu0 %v442
    %582 = vmatpush.msra.mxu0 %v441
    %583 = vmatpush.msra.mxu0 %v440
    %584 = vmatpush.msra.mxu0 %v439
    %585 = vmatpush.msra.mxu0 %v438
    %586 = vmatpush.msra.mxu0 %v437
    %587 = vmatpush.msra.mxu0 %v436
    %588 = vmatpush.msra.mxu0 %v435
    %589 = vmatpush.msra.mxu0 %v434
    %590 = vmatpush.msra.mxu0 %v433
    %591 = vmatpush.msra.mxu0 %v432
    %592 = vmatpush.msra.mxu0 %v431
    %593 = vmatpush.msra.mxu0 %v430
    %594 = vmatmul.f32.gmra.mxu0 %v362
    %v595 = vpop.f32.mrf.mxu0
    %v596 = vadd.f32 %v576, %v595
    %597 = vdwg.mxu0
    %598 = vmatpush.msra.mxu0 %v461
    %599 = vmatpush.msra.mxu0 %v460
    %600 = vmatpush.msra.mxu0 %v459
    %601 = vmatpush.msra.mxu0 %v458
    %602 = vmatpush.msra.mxu0 %v457
    %603 = vmatpush.msra.mxu0 %v456
    %604 = vmatpush.msra.mxu0 %v455
    %605 = vmatpush.msra.mxu0 %v454
    %606 = vmatpush.msra.mxu0 %v453
    %607 = vmatpush.msra.mxu0 %v452
    %608 = vmatpush.msra.mxu0 %v451
    %609 = vmatpush.msra.mxu0 %v450
    %610 = vmatpush.msra.mxu0 %v449
    %611 = vmatpush.msra.mxu0 %v448
    %612 = vmatpush.msra.mxu0 %v447
    %613 = vmatpush.msra.mxu0 %v446
    %614 = vmatmul.f32.gmra.mxu0 %v363
    %v615 = vpop.f32.mrf.mxu0
    %v616 = vadd.f32 %v596, %v615
    %617 = vdwg.mxu0
    %618 = vmatpush.msra.mxu0 %v477
    %619 = vmatpush.msra.mxu0 %v476
    %620 = vmatpush.msra.mxu0 %v475
    %621 = vmatpush.msra.mxu0 %v474
    %622 = vmatpush.msra.mxu0 %v473
    %623 = vmatpush.msra.mxu0 %v472
    %624 = vmatpush.msra.mxu0 %v471
    %625 = vmatpush.msra.mxu0 %v470
    %626 = vmatpush.msra.mxu0 %v469
    %627 = vmatpush.msra.mxu0 %v468
    %628 = vmatpush.msra.mxu0 %v467
    %629 = vmatpush.msra.mxu0 %v466
    %630 = vmatpush.msra.mxu0 %v465
    %631 = vmatpush.msra.mxu0 %v464
    %632 = vmatpush.msra.mxu0 %v463
    %633 = vmatpush.msra.mxu0 %v462
    %634 = vmatmul.f32.gmra.mxu0 %v364
    %v635 = vpop.f32.mrf.mxu0
    %v636 = vadd.f32 %v616, %v635
    %637 = vdwg.mxu0
    %638 = vmatpush.msra.mxu0 %v493
    %639 = vmatpush.msra.mxu0 %v492
    %640 = vmatpush.msra.mxu0 %v491
    %641 = vmatpush.msra.mxu0 %v490
    %642 = vmatpush.msra.mxu0 %v489
    %643 = vmatpush.msra.mxu0 %v488
    %644 = vmatpush.msra.mxu0 %v487
    %645 = vmatpush.msra.mxu0 %v486
    %646 = vmatpush.msra.mxu0 %v485
    %647 = vmatpush.msra.mxu0 %v484
    %648 = vmatpush.msra.mxu0 %v483
    %649 = vmatpush.msra.mxu0 %v482
    %650 = vmatpush.msra.mxu0 %v481
    %651 = vmatpush.msra.mxu0 %v480
    %652 = vmatpush.msra.mxu0 %v479
    %653 = vmatpush.msra.mxu0 %v478
    %654 = vmatmul.f32.gmra.mxu0 %v365
    %v655 = vpop.f32.mrf.mxu0
    %v656 = vadd.f32 %v636, %v655
    %657 = vdwg.mxu0
    %vm658 = vcmask 25600
    %v659 = vsel %vm658, %v656, -inf
    %660 = vmax.xlane.f32.xlu0 %v659
    %v661 = vpop.xlane.xlu0 %660
    %v662 = vsub.f32 %v656, %v661
    %v663 = vmul.f32 %v662, 1.442695
    %v664 = vpow.pop %v663
    %v665 = vsel %vm658, %v664, 0.0
    %666 = vadd.xlane.f32.xlu0 %v665
    %v667 = vpop.xlane.xlu0 %666
    %v668 = vrcp.pop %v667
    %v669 = vmul.f32 %v667, %v668
    %v670 = vsub.f32 1.0, %v669
    %v671 = vmul.f32 %v668, %v670
    %v672 = vadd.f32 %v668, %v671
    %vm673 = vweird.f32 %v667
    %vm674 = vweird.f32 %v668
    %vm675 = vmor %vm673, %vm674
    %v676 = vsel %vm675, %v668, %v672
    %v677 = vand.u32 2147483647, %v667
    %vm678 = vcmp.eq.f32.partialorder %v677, 8.507059e+37
    %v679 = vand.u32 %v667, 2147483648
    %v680 = vor.u32 1.1754944e-38, %v679
    %v681 = vsel %vm678, %v680, %v676
    %v682 = vmul.f32 %v664, %v681
    %v683 = vld [vmem:[%s7] sm:$0xf]
    %vm684 = vcmask 31744
    %v686 = vsel %vm684, %v682, 0
    %vm688 = vcmask 1043456
    %v690 = vsel %vm688, %v683, 0
    %692 = vmatpush.msra.mxu0 0.0
    %693 = vmatpush.msra.mxu0 0.0
    %694 = vmatpush.msra.mxu0 0.0
    %695 = vmatpush.msra.mxu0 0.0
    %696 = vmatpush.msra.mxu0 0.0
    %697 = vmatpush.msra.mxu0 0.0
    %698 = vmatpush.msra.mxu0 0.0
    %699 = vmatpush.msra.mxu0 0.0
    %700 = vmatpush.msra.mxu0 0.0
    %701 = vmatpush.msra.mxu0 0.0
    %702 = vmatpush.msra.mxu0 0.0
    %703 = vmatpush.msra.mxu0 0.0
    %704 = vmatpush.msra.mxu0 0.0
    %705 = vmatpush.msra.mxu0 0.0
    %706 = vmatpush.msra.mxu0 0.0
    %707 = vmatpush.msra.mxu0 %v690
    %708 = vmatmul.f32.gmra.mxu0 %v686
    %v709 = vpop.f32.mrf.mxu0
    %v710 = vadd.f32 0.0, %v709
    %711 = vdwg.mxu0
    %v712 = vmul.f32 %v357, %v710
    %v713 = vmul.f32 %v355, %v710
    %v714 = vld [vmem:[%s8] sm:$0xff]
    %v715 = vld [vmem:[%s8 + $0x8] sm:$0xff]
    %v716 = vld [vmem:[%s8 + $0x10] sm:$0xff]
    %v717 = vld [vmem:[%s8 + $0x18] sm:$0xff]
    %v718 = vld [vmem:[%s8 + $0x20] sm:$0xff]
    %v719 = vld [vmem:[%s8 + $0x28] sm:$0xff]
    %v720 = vld [vmem:[%s8 + $0x30] sm:$0xff]
    %v721 = vld [vmem:[%s8 + $0x38] sm:$0xff]
    %v722 = vld [vmem:[%s8 + $0x40] sm:$0xff]
    %v723 = vld [vmem:[%s8 + $0x48] sm:$0xff]
    %v724 = vld [vmem:[%s8 + $0x50] sm:$0xff]
    %v725 = vld [vmem:[%s8 + $0x58] sm:$0xff]
    %v726 = vld [vmem:[%s8 + $0x60] sm:$0xff]
    %v727 = vld [vmem:[%s8 + $0x68] sm:$0xff]
    %v728 = vld [vmem:[%s8 + $0x70] sm:$0xff]
    %v729 = vld [vmem:[%s8 + $0x78] sm:$0xff]
    %v730 = vld [vmem:[%s8 + $0x80] sm:$0xff]
    %v731 = vld [vmem:[%s8 + $0x88] sm:$0xff]
    %v732 = vld [vmem:[%s8 + $0x90] sm:$0xff]
    %v733 = vld [vmem:[%s8 + $0x98] sm:$0xff]
    %v734 = vld [vmem:[%s8 + $0xa0] sm:$0xff]
    %v735 = vld [vmem:[%s8 + $0xa8] sm:$0xff]
    %v736 = vld [vmem:[%s8 + $0xb0] sm:$0xff]
    %v737 = vld [vmem:[%s8 + $0xb8] sm:$0xff]
    %v738 = vld [vmem:[%s8 + $0xc0] sm:$0xff]
    %v739 = vld [vmem:[%s8 + $0xc8] sm:$0xff]
    %v740 = vld [vmem:[%s8 + $0xd0] sm:$0xff]
    %v741 = vld [vmem:[%s8 + $0xd8] sm:$0xff]
    %v742 = vld [vmem:[%s8 + $0xe0] sm:$0xff]
    %v743 = vld [vmem:[%s8 + $0xe8] sm:$0xff]
    %v744 = vld [vmem:[%s8 + $0xf0] sm:$0xff]
    %v745 = vld [vmem:[%s8 + $0xf8] sm:$0xff]
    %746 = vmatpush.msra.mxu0 %v729
    %747 = vmatpush.msra.mxu0 %v728
    %748 = vmatpush.msra.mxu0 %v727
    %749 = vmatpush.msra.mxu0 %v726
    %750 = vmatpush.msra.mxu0 %v725
    %751 = vmatpush.msra.mxu0 %v724
    %752 = vmatpush.msra.mxu0 %v723
    %753 = vmatpush.msra.mxu0 %v722
    %754 = vmatpush.msra.mxu0 %v721
    %755 = vmatpush.msra.mxu0 %v720
    %756 = vmatpush.msra.mxu0 %v719
    %757 = vmatpush.msra.mxu0 %v718
    %758 = vmatpush.msra.mxu0 %v717
    %759 = vmatpush.msra.mxu0 %v716
    %760 = vmatpush.msra.mxu0 %v715
    %761 = vmatpush.msra.mxu0 %v714
    %762 = vmatmul.f32.gmra.mxu0 %v712
    %v763 = vpop.f32.mrf.mxu0
    %v764 = vadd.f32 0.0, %v763
    %765 = vdwg.mxu0
    %766 = vmatpush.msra.mxu0 %v745
    %767 = vmatpush.msra.mxu0 %v744
    %768 = vmatpush.msra.mxu0 %v743
    %769 = vmatpush.msra.mxu0 %v742
    %770 = vmatpush.msra.mxu0 %v741
    %771 = vmatpush.msra.mxu0 %v740
    %772 = vmatpush.msra.mxu0 %v739
    %773 = vmatpush.msra.mxu0 %v738
    %774 = vmatpush.msra.mxu0 %v737
    %775 = vmatpush.msra.mxu0 %v736
    %776 = vmatpush.msra.mxu0 %v735
    %777 = vmatpush.msra.mxu0 %v734
    %778 = vmatpush.msra.mxu0 %v733
    %779 = vmatpush.msra.mxu0 %v732
    %780 = vmatpush.msra.mxu0 %v731
    %781 = vmatpush.msra.mxu0 %v730
    %782 = vmatmul.f32.gmra.mxu0 %v713
    %v783 = vpop.f32.mrf.mxu0
    %v784 = vadd.f32 %v764, %v783
    %785 = vdwg.mxu0
    %vm786 = vcmask 517120
    %787 = vst.msk [vmem:[#allocation2] sm:$0x3] %vm786, %v784
    %788 = vst.msk [vmem:[#allocation4] sm:$0x3] %vm658, %v682
    // Predicated region
    $region38: #{tpu_custom_call.1} parent=1 // pred_check
      _
    $region39: #{tpu_custom_call.1} parent=1 // pred_check_branch
      %790 = sbr.rel (0) target = $region41
    $region40: #{tpu_custom_call.1} parent=1 // pred_region
      %792 = vsyncadd [#allocation3], 0
      %s794 = sshll.u32 [#allocation2], 4
      %s795 = int_to_ptr.vmem [resolvable:$true] %s794
      %s796 = sshll.u32 %s9, 4
      %s797 = int_to_ptr.hbm [resolvable:$true] %s796
      %799 = dma.vmem_to_hbm [thread:$0]  %s795, 32, %s797, [#allocation3]
    $region41: #{tpu_custom_call.1} parent=1 // pred_fallthru
      _
    // Predicated region
    $region42: #{tpu_custom_call.1} parent=1 // pred_check
      _
    $region43: #{tpu_custom_call.1} parent=1 // pred_check_branch
      %801 = sbr.rel (0) target = $region45
    $region44: #{tpu_custom_call.1} parent=1 // pred_region
      %803 = vsyncadd [#allocation5], 0
      %s805 = sshll.u32 [#allocation4], 4
      %s806 = int_to_ptr.vmem [resolvable:$true] %s805
      %s807 = sshll.u32 %s10, 4
      %s808 = int_to_ptr.hbm [resolvable:$true] %s807
      %810 = dma.vmem_to_hbm [thread:$0]  %s806, 32, %s808, [#allocation5]
    $region45: #{tpu_custom_call.1} parent=1 // pred_fallthru
      _
    // Predicated region
    $region46: #{tpu_custom_call.1} parent=1 // pred_check
      _
    $region47: #{tpu_custom_call.1} parent=1 // pred_check_branch
      %812 = sbr.rel (0) target = $region49
    $region48: #{tpu_custom_call.1} parent=1 // pred_region
      %814 = dma.done [#allocation3], 32
    $region49: #{tpu_custom_call.1} parent=1 // pred_fallthru
      _
    // Predicated region
    $region50: #{tpu_custom_call.1} parent=1 // pred_check
      _
    $region51: #{tpu_custom_call.1} parent=1 // pred_check_branch
      %816 = sbr.rel (0) target = $region53
    $region52: #{tpu_custom_call.1} parent=1 // pred_region
      %818 = dma.done [#allocation5], 32
    $region53: #{tpu_custom_call.1} parent=1 // pred_fallthru
      _
    %819 = vsyncpa [#allocation3], 1
    %820 = vsyncpa [#allocation5], 1

</llo_original>
